<compile_context>
chip_gen: v7x
topology: tpu7x:2x2x1
jax: 0.10.0
libtpu: 0.0.40
codegen_flags: <defaults>
</compile_context>

<pallas_src>
import jax
import jax.numpy as jnp
from jax.experimental import pallas as pl
from jax.experimental.pallas import tpu as pltpu


def _round_up(x, m):
    return ((x + m - 1) // m) * m


def _make_kernel(num_fused_layers, compute_dtype):
    """Kernel ref order:
         bx, tx                              streamed (TILE, in_b) / (TILE, in_t)
         W0b, W0t, b0                        layer-0 column-padded weights + fused bias
         (W1, b1, ..., W_{L-1}, b_{L-1})     block-diagonal fused hidden layers
         swap, half_ones                     tail constants (2H, 2H), (2H, 1)
         out                                 (TILE, 1) f32
    """
    cast_hidden = jnp.dtype(compute_dtype) != jnp.dtype(jnp.float32)

    def kernel(*refs):
        bx_ref, tx_ref = refs[0], refs[1]
        w0b_ref, w0t_ref, b0_ref = refs[2], refs[3], refs[4]
        fused = refs[5:5 + 2 * num_fused_layers]
        swap_ref = refs[5 + 2 * num_fused_layers]
        ones_ref = refs[6 + 2 * num_fused_layers]
        out_ref = refs[7 + 2 * num_fused_layers]

        # ---- Layer 0: branch & trunk inputs hit their own column-padded
        # weight blocks; adding the two partial results IS the feature concat,
        # so no wrapper-side concatenate / HBM round trip is needed.
        acc = jnp.dot(bx_ref[...], w0b_ref[...], preferred_element_type=jnp.float32)
        acc = acc + jnp.dot(tx_ref[...], w0t_ref[...], preferred_element_type=jnp.float32)
        acc = acc + b0_ref[...]                     # f32 bias add, (1, 2H) broadcasts
        h = jnp.maximum(acc, 0.0)                   # ReLU after every Linear (matches module)

        # ---- Hidden layers: block-diagonal fused (branch | trunk) weights.
        for layer in range(num_fused_layers):
            w_ref = fused[2 * layer]
            b_ref = fused[2 * layer + 1]
            x_in = h.astype(compute_dtype) if cast_hidden else h
            acc = jnp.dot(x_in, w_ref[...], preferred_element_type=jnp.float32)
            acc = acc + b_ref[...]
            h = jnp.maximum(acc, 0.0)

        # ---- Tail on the MXU (not lane slices + XLU reduce):
        #   h_swapped = h @ P       (P swaps branch/trunk halves; exact)
        #   out       = (h * h_swapped) @ (0.5 * ones(2H, 1))
        # since 0.5 * sum_{2H}(b*t + t*b) == sum_H(b*t).
        h_swapped = jnp.dot(h, swap_ref[...], preferred_element_type=jnp.float32)
        prod = h * h_swapped                        # f32 VPU elementwise
        out_ref[...] = jnp.dot(prod, ones_ref[...],
                               preferred_element_type=jnp.float32)

    return kernel


def _pack_params(branch_params, trunk_params, compute_dtype):
    """Layer-0 column-padded weights, block-diagonal hidden layers, tail constants."""
    num_layers = len(branch_params)
    assert len(trunk_params) == num_layers and num_layers >= 1
    hidden = branch_params[0][0].shape[1]
    assert trunk_params[0][0].shape[1] == hidden, "Branch and trunk dims must match"
    two_h = 2 * hidden

    (wb0, bb0), (wt0, bt0) = branch_params[0], trunk_params[0]
    w0b = jnp.zeros((wb0.shape[0], two_h), jnp.float32).at[:, :hidden].set(wb0)
    w0t = jnp.zeros((wt0.shape[0], two_h), jnp.float32).at[:, hidden:].set(wt0)
    b0 = jnp.concatenate([bb0, bt0], axis=-1).astype(jnp.float32)

    fused = []
    for (wb, bb), (wt, bt) in zip(branch_params[1:], trunk_params[1:]):
        kb, nb = wb.shape
        kt, nt = wt.shape
        w = jnp.zeros((kb + kt, nb + nt), jnp.float32)
        w = w.at[:kb, :nb].set(wb).at[kb:, nb:].set(wt)
        fused.append((w.astype(compute_dtype),
                      jnp.concatenate([bb, bt], axis=-1).astype(jnp.float32)))

    eye = jnp.eye(hidden, dtype=jnp.float32)
    zero = jnp.zeros((hidden, hidden), jnp.float32)
    swap = jnp.block([[zero, eye], [eye, zero]])          # (2H, 2H) half-swap permutation
    half_ones = jnp.full((two_h, 1), 0.5, dtype=jnp.float32)

    return (w0b.astype(compute_dtype), w0t.astype(compute_dtype), b0,
            fused, swap, half_ones, hidden)


def _vmem_limit_bytes(tile, in_b, in_t, two_h, num_fused, compute_dtype):
    """VMEM budget from the lane-padded footprint, capped below v7x's 64 MiB."""
    itemsize = jnp.dtype(compute_dtype).itemsize
    lane = lambda n: _round_up(n, 128)
    sub = lambda n: _round_up(n, 8)

    total = 0
    # Double-buffered streamed tiles (minor dim lane-pads to 128 in VMEM).
    total += 2 * tile * lane(in_b) * itemsize
    total += 2 * tile * lane(in_t) * itemsize
    total += 2 * tile * lane(1) * 4
    # Grid-invariant params (budget 2 buffers each even though fetched once).
    w = (sub(in_b) + sub(in_t)) * lane(two_h) * itemsize
    w += num_fused * sub(two_h) * lane(two_h) * itemsize
    w += sub(two_h) * lane(two_h) * 4                     # swap matrix, f32
    w += sub(two_h) * lane(1) * 4                         # half-ones, f32
    w += (num_fused + 1) * sub(1) * lane(two_h) * 4       # biases, f32
    total += 2 * w
    # In-kernel activation / spill workspace (h, h_swapped, prod, acc + slack).
    total += 6 * tile * lane(two_h) * 4
    return int(min(48 * 2**20, max(16 * 2**20, 2 * total)))


def deeponet_forward(branch_x, trunk_x, branch_params, trunk_params,
                     *, tile_b=2048, compute_dtype=jnp.float32):
    """branch_params / trunk_params: list of (W, b) with W:(in,out), b:(1,out).

    compute_dtype=jnp.bfloat16 runs matmuls in bf16 with f32 accumulation
    (opt-in; f32 is the default per the v5e note).
    """
    batch, in_b = branch_x.shape
    assert trunk_x.shape[0] == batch
    in_t = trunk_x.shape[1]

    w0b, w0t, b0, fused, swap, half_ones, hidden = _pack_params(
        branch_params, trunk_params, compute_dtype)
    two_h = 2 * hidden
    num_fused = len(fused)

    # --- batch tiling: as large as allowed (per-step overhead dominates at
    # hidden=32), balanced across tiles, with minimal remainder padding.
    sublane = 16 if jnp.dtype(compute_dtype) == jnp.dtype(jnp.bfloat16) else 8
    tile_cap = max(sublane, _round_up(min(tile_b, batch), sublane))
    num_tiles = -(-batch // tile_cap)
    tile = _round_up(-(-batch // num_tiles), sublane)
    batch_pad = tile * num_tiles

    bx = branch_x if branch_x.dtype == jnp.dtype(compute_dtype) else branch_x.astype(compute_dtype)
    tx = trunk_x if trunk_x.dtype == jnp.dtype(compute_dtype) else trunk_x.astype(compute_dtype)
    if batch_pad != batch:
        pad = batch_pad - batch            # < tile rows; padded rows sliced off below
        bx = jnp.pad(bx, ((0, pad), (0, 0)))
        tx = jnp.pad(tx, ((0, pad), (0, 0)))

    flat_params = [w0b, w0t, b0]
    for w, b in fused:
        flat_params += [w, b]
    flat_params += [swap, half_ones]

    in_specs = [
        pl.BlockSpec((tile, in_b), lambda i: (i, 0)),
        pl.BlockSpec((tile, in_t), lambda i: (i, 0)),
    ]
    # Constant index maps: params are DMA'd once and stay VMEM-resident.
    for p in flat_params:
        in_specs.append(pl.BlockSpec(p.shape, lambda i: (0, 0)))
    out_spec = pl.BlockSpec((tile, 1), lambda i: (i, 0))
    # TODO(synk): a lane-dense (1, tile) output (review rec #4) needs a
    # (tile,1)->(1,tile) relayout that would land back on the XLU slot just
    # freed by the MXU tail; with the column output the store slot stays well
    # below the vld/MXU slots, so it is intentionally kept as-is.

    kernel = _make_kernel(num_fused, compute_dtype)
    out = pl.pallas_call(
        kernel,
        out_shape=jax.ShapeDtypeStruct((batch_pad, 1), jnp.float32),
        grid=(num_tiles,),
        in_specs=in_specs,
        out_specs=out_spec,
        compiler_params=pltpu.CompilerParams(
            # TODO(synk): on v7x verify "parallel" shards the batch grid across
            # both TensorCores; if not, switch this axis to pltpu.CORE_PARALLEL.
            dimension_semantics=("parallel",),
            vmem_limit_bytes=_vmem_limit_bytes(
                tile, in_b, in_t, two_h, num_fused, compute_dtype),
        ),
    )(bx, tx, *flat_params)
    return out[:batch]


def init_params(key, in_dim, hidden, num_layers):
    """Deterministic synthetic init (PyTorch-Linear-like uniform)."""
    params = []
    dims = [in_dim] + [hidden] * num_layers
    for layer in range(num_layers):
        key, kw, kb = jax.random.split(key, 3)
        fan_in = dims[layer]
        bound = 1.0 / jnp.sqrt(fan_in)
        w = jax.random.uniform(kw, (dims[layer], dims[layer + 1]),
                               minval=-bound, maxval=bound, dtype=jnp.float32)
        b = jax.random.uniform(kb, (1, dims[layer + 1]),
                               minval=-bound, maxval=bound, dtype=jnp.float32)
        params.append((w, b))
    return params, key


def reference_forward(branch_x, trunk_x, branch_params, trunk_params):
    """Plain-JAX reference mirroring the PyTorch module."""
    def mlp(x, params):
        h = x
        for w, b in params:
            h = jnp.maximum(h @ w + b, 0.0)
        return h
    b = mlp(branch_x, branch_params)
    t = mlp(trunk_x, trunk_params)
    return jnp.sum(b * t, axis=-1, keepdims=True)


if __name__ == "__main__":
    branch_input_dim = 16
    trunk_input_dim = 8
    hidden = 32            # branch_hidden == trunk_hidden (module asserts this)
    num_layers = 3

    key = jax.random.PRNGKey(0)
    branch_params, key = init_params(key, branch_input_dim, hidden, num_layers)
    trunk_params, key = init_params(key, trunk_input_dim, hidden, num_layers)

    # --- small batch (module-consistent toy shapes), single tile, f32 ---
    batch = 8
    key, kbx, ktx = jax.random.split(key, 3)
    bx = jax.random.normal(kbx, (batch, branch_input_dim), dtype=jnp.float32)
    tx = jax.random.normal(ktx, (batch, trunk_input_dim), dtype=jnp.float32)
    out = jax.block_until_ready(deeponet_forward(bx, tx, branch_params, trunk_params))
    ref = reference_forward(bx, tx, branch_params, trunk_params)
    assert out.shape == (batch, 1), out.shape
    assert jnp.allclose(out, ref, atol=1e-3, rtol=1e-3)

    # --- multi-tile grid + remainder-padding path (tile forced small), f32 ---
    batch2 = 1000
    key, kbx2, ktx2 = jax.random.split(key, 3)
    bx2 = jax.random.normal(kbx2, (batch2, branch_input_dim), dtype=jnp.float32)
    tx2 = jax.random.normal(ktx2, (batch2, trunk_input_dim), dtype=jnp.float32)
    out2 = jax.block_until_ready(
        deeponet_forward(bx2, tx2, branch_params, trunk_params, tile_b=256))
    ref2 = reference_forward(bx2, tx2, branch_params, trunk_params)
    assert out2.shape == (batch2, 1), out2.shape
    assert jnp.allclose(out2, ref2, atol=1e-3, rtol=1e-3)

    # --- default large-tile path on the same data ---
    out3 = jax.block_until_ready(
        deeponet_forward(bx2, tx2, branch_params, trunk_params))
    assert out3.shape == (batch2, 1), out3.shape
    assert jnp.allclose(out3, ref2, atol=1e-3, rtol=1e-3)

    # --- optional bf16-matmul / f32-accumulate path (loose tolerance vs f32) ---
    out4 = jax.block_until_ready(
        deeponet_forward(bx2, tx2, branch_params, trunk_params,
                         compute_dtype=jnp.bfloat16))
    assert out4.shape == (batch2, 1), out4.shape
    assert jnp.allclose(out4, ref2, atol=1e-1, rtol=1e-1)

    print("KERNEL_OK")
</pallas_src>

<mosaic_0001>
module attributes {stable_mosaic.version = 11 : i64} {
  func.func @kernel(%arg0: i32, %arg1: memref<8x16xf32, #tpu.memory_space<vmem>>, %arg2: memref<8x8xf32, #tpu.memory_space<vmem>>, %arg3: memref<16x64xf32, #tpu.memory_space<vmem>>, %arg4: memref<8x64xf32, #tpu.memory_space<vmem>>, %arg5: memref<1x64xf32, #tpu.memory_space<vmem>>, %arg6: memref<64x64xf32, #tpu.memory_space<vmem>>, %arg7: memref<1x64xf32, #tpu.memory_space<vmem>>, %arg8: memref<64x64xf32, #tpu.memory_space<vmem>>, %arg9: memref<1x64xf32, #tpu.memory_space<vmem>>, %arg10: memref<64x64xf32, #tpu.memory_space<vmem>>, %arg11: memref<64x1xf32, #tpu.memory_space<vmem>>, %arg12: memref<8x1xf32, #tpu.memory_space<vmem>>) attributes {dimension_semantics = [#tpu.dimension_semantics<parallel>], iteration_bounds = array<i64: 1>, scalar_prefetch = 0 : i64, scratch_operands = 0 : i64, tpu.core_type = #tpu.core_type<tc>, window_params = [{transform_indices = @transform_0, window_bounds = array<i64: 8, 16>}, {transform_indices = @transform_1, window_bounds = array<i64: 8, 8>}, {pipeline_mode = #tpu.pipeline_mode<synchronous>, transform_indices = @transform_2, window_bounds = array<i64: 16, 64>}, {pipeline_mode = #tpu.pipeline_mode<synchronous>, transform_indices = @transform_3, window_bounds = array<i64: 8, 64>}, {pipeline_mode = #tpu.pipeline_mode<synchronous>, transform_indices = @transform_4, window_bounds = array<i64: 1, 64>}, {pipeline_mode = #tpu.pipeline_mode<synchronous>, transform_indices = @transform_5, window_bounds = array<i64: 64, 64>}, {pipeline_mode = #tpu.pipeline_mode<synchronous>, transform_indices = @transform_6, window_bounds = array<i64: 1, 64>}, {pipeline_mode = #tpu.pipeline_mode<synchronous>, transform_indices = @transform_7, window_bounds = array<i64: 64, 64>}, {pipeline_mode = #tpu.pipeline_mode<synchronous>, transform_indices = @transform_8, window_bounds = array<i64: 1, 64>}, {pipeline_mode = #tpu.pipeline_mode<synchronous>, transform_indices = @transform_9, window_bounds = array<i64: 64, 64>}, {pipeline_mode = #tpu.pipeline_mode<synchronous>, transform_indices = @transform_10, window_bounds = array<i64: 64, 1>}, {transform_indices = @transform_11, window_bounds = array<i64: 8, 1>}]} {
    %c0 = arith.constant 0 : index
    %c0_0 = arith.constant 0 : index
    %0 = vector.load %arg1[%c0, %c0_0] : memref<8x16xf32, #tpu.memory_space<vmem>>, vector<8x16xf32>
    %c0_1 = arith.constant 0 : index
    %c0_2 = arith.constant 0 : index
    %1 = vector.load %arg3[%c0_1, %c0_2] : memref<16x64xf32, #tpu.memory_space<vmem>>, vector<16x64xf32>
    %cst = arith.constant dense<0.000000e+00> : vector<8x64xf32>
    %2 = tpu.matmul %0, %1, %cst {dimension_numbers = #tpu.dot_dimension_numbers<[1], [0], [0], [1], [0, 0, 1, 1], [], []>} : vector<8x16xf32>, vector<16x64xf32>, vector<8x64xf32> -> vector<8x64xf32>
    %c0_3 = arith.constant 0 : index
    %c0_4 = arith.constant 0 : index
    %3 = vector.load %arg2[%c0_3, %c0_4] : memref<8x8xf32, #tpu.memory_space<vmem>>, vector<8x8xf32>
    %c0_5 = arith.constant 0 : index
    %c0_6 = arith.constant 0 : index
    %4 = vector.load %arg4[%c0_5, %c0_6] : memref<8x64xf32, #tpu.memory_space<vmem>>, vector<8x64xf32>
    %cst_7 = arith.constant dense<0.000000e+00> : vector<8x64xf32>
    %5 = tpu.matmul %3, %4, %cst_7 {dimension_numbers = #tpu.dot_dimension_numbers<[1], [0], [0], [1], [0, 0, 1, 1], [], []>} : vector<8x8xf32>, vector<8x64xf32>, vector<8x64xf32> -> vector<8x64xf32>
    %6 = arith.addf %2, %5 : vector<8x64xf32>
    %c0_8 = arith.constant 0 : index
    %c0_9 = arith.constant 0 : index
    %7 = vector.load %arg5[%c0_8, %c0_9] : memref<1x64xf32, #tpu.memory_space<vmem>>, vector<1x64xf32>
    %8 = vector.broadcast %7 : vector<1x64xf32> to vector<8x64xf32>
    %9 = arith.addf %6, %8 : vector<8x64xf32>
    %cst_10 = arith.constant 0.000000e+00 : f32
    %10 = vector.broadcast %cst_10 : f32 to vector<8x64xf32>
    %11 = arith.maximumf %9, %10 : vector<8x64xf32>
    %c0_11 = arith.constant 0 : index
    %c0_12 = arith.constant 0 : index
    %12 = vector.load %arg6[%c0_11, %c0_12] : memref<64x64xf32, #tpu.memory_space<vmem>>, vector<64x64xf32>
    %cst_13 = arith.constant dense<0.000000e+00> : vector<8x64xf32>
    %13 = tpu.matmul %11, %12, %cst_13 {dimension_numbers = #tpu.dot_dimension_numbers<[1], [0], [0], [1], [0, 0, 1, 1], [], []>} : vector<8x64xf32>, vector<64x64xf32>, vector<8x64xf32> -> vector<8x64xf32>
    %c0_14 = arith.constant 0 : index
    %c0_15 = arith.constant 0 : index
    %14 = vector.load %arg7[%c0_14, %c0_15] : memref<1x64xf32, #tpu.memory_space<vmem>>, vector<1x64xf32>
    %15 = vector.broadcast %14 : vector<1x64xf32> to vector<8x64xf32>
    %16 = arith.addf %13, %15 : vector<8x64xf32>
    %cst_16 = arith.constant 0.000000e+00 : f32
    %17 = vector.broadcast %cst_16 : f32 to vector<8x64xf32>
    %18 = arith.maximumf %16, %17 : vector<8x64xf32>
    %c0_17 = arith.constant 0 : index
    %c0_18 = arith.constant 0 : index
    %19 = vector.load %arg8[%c0_17, %c0_18] : memref<64x64xf32, #tpu.memory_space<vmem>>, vector<64x64xf32>
    %cst_19 = arith.constant dense<0.000000e+00> : vector<8x64xf32>
    %20 = tpu.matmul %18, %19, %cst_19 {dimension_numbers = #tpu.dot_dimension_numbers<[1], [0], [0], [1], [0, 0, 1, 1], [], []>} : vector<8x64xf32>, vector<64x64xf32>, vector<8x64xf32> -> vector<8x64xf32>
    %c0_20 = arith.constant 0 : index
    %c0_21 = arith.constant 0 : index
    %21 = vector.load %arg9[%c0_20, %c0_21] : memref<1x64xf32, #tpu.memory_space<vmem>>, vector<1x64xf32>
    %22 = vector.broadcast %21 : vector<1x64xf32> to vector<8x64xf32>
    %23 = arith.addf %20, %22 : vector<8x64xf32>
    %cst_22 = arith.constant 0.000000e+00 : f32
    %24 = vector.broadcast %cst_22 : f32 to vector<8x64xf32>
    %25 = arith.maximumf %23, %24 : vector<8x64xf32>
    %c0_23 = arith.constant 0 : index
    %c0_24 = arith.constant 0 : index
    %26 = vector.load %arg10[%c0_23, %c0_24] : memref<64x64xf32, #tpu.memory_space<vmem>>, vector<64x64xf32>
    %cst_25 = arith.constant dense<0.000000e+00> : vector<8x64xf32>
    %27 = tpu.matmul %25, %26, %cst_25 {dimension_numbers = #tpu.dot_dimension_numbers<[1], [0], [0], [1], [0, 0, 1, 1], [], []>} : vector<8x64xf32>, vector<64x64xf32>, vector<8x64xf32> -> vector<8x64xf32>
    %28 = arith.mulf %25, %27 : vector<8x64xf32>
    %c0_26 = arith.constant 0 : index
    %c0_27 = arith.constant 0 : index
    %29 = vector.load %arg11[%c0_26, %c0_27] : memref<64x1xf32, #tpu.memory_space<vmem>>, vector<64x1xf32>
    %cst_28 = arith.constant dense<0.000000e+00> : vector<8x1xf32>
    %30 = tpu.matmul %28, %29, %cst_28 {dimension_numbers = #tpu.dot_dimension_numbers<[1], [0], [0], [1], [0, 0, 1, 1], [], []>} : vector<8x64xf32>, vector<64x1xf32>, vector<8x1xf32> -> vector<8x1xf32>
    %c0_29 = arith.constant 0 : index
    %c0_30 = arith.constant 0 : index
    %31 = vector.load %arg12[%c0_29, %c0_30] : memref<8x1xf32, #tpu.memory_space<vmem>>, vector<8x1xf32>
    tpu.vector_store %arg12[%c0_29, %c0_30], %30 {strides = array<i32>} : memref<8x1xf32, #tpu.memory_space<vmem>>, vector<8x1xf32>,
    return
  }
  func.func @transform_0(%arg0: i32) -> (i32, i32) {
    %c0_i32 = arith.constant 0 : i32
    %c0_i32_0 = arith.constant 0 : i32
    return %arg0, %c0_i32 : i32, i32
  }
  func.func @transform_1(%arg0: i32) -> (i32, i32) {
    %c0_i32 = arith.constant 0 : i32
    %c0_i32_0 = arith.constant 0 : i32
    return %arg0, %c0_i32 : i32, i32
  }
  func.func @transform_2(%arg0: i32) -> (i32, i32) {
    %c0_i32 = arith.constant 0 : i32
    %c0_i32_0 = arith.constant 0 : i32
    %c0_i32_1 = arith.constant 0 : i32
    return %c0_i32, %c0_i32_0 : i32, i32
  }
  func.func @transform_3(%arg0: i32) -> (i32, i32) {
    %c0_i32 = arith.constant 0 : i32
    %c0_i32_0 = arith.constant 0 : i32
    %c0_i32_1 = arith.constant 0 : i32
    return %c0_i32, %c0_i32_0 : i32, i32
  }
  func.func @transform_4(%arg0: i32) -> (i32, i32) {
    %c0_i32 = arith.constant 0 : i32
    %c0_i32_0 = arith.constant 0 : i32
    %c0_i32_1 = arith.constant 0 : i32
    return %c0_i32, %c0_i32_0 : i32, i32
  }
  func.func @transform_5(%arg0: i32) -> (i32, i32) {
    %c0_i32 = arith.constant 0 : i32
    %c0_i32_0 = arith.constant 0 : i32
    %c0_i32_1 = arith.constant 0 : i32
    return %c0_i32, %c0_i32_0 : i32, i32
  }
  func.func @transform_6(%arg0: i32) -> (i32, i32) {
    %c0_i32 = arith.constant 0 : i32
    %c0_i32_0 = arith.constant 0 : i32
    %c0_i32_1 = arith.constant 0 : i32
    return %c0_i32, %c0_i32_0 : i32, i32
  }
  func.func @transform_7(%arg0: i32) -> (i32, i32) {
    %c0_i32 = arith.constant 0 : i32
    %c0_i32_0 = arith.constant 0 : i32
    %c0_i32_1 = arith.constant 0 : i32
    return %c0_i32, %c0_i32_0 : i32, i32
  }
  func.func @transform_8(%arg0: i32) -> (i32, i32) {
    %c0_i32 = arith.constant 0 : i32
    %c0_i32_0 = arith.constant 0 : i32
    %c0_i32_1 = arith.constant 0 : i32
    return %c0_i32, %c0_i32_0 : i32, i32
  }
  func.func @transform_9(%arg0: i32) -> (i32, i32) {
    %c0_i32 = arith.constant 0 : i32
    %c0_i32_0 = arith.constant 0 : i32
    %c0_i32_1 = arith.constant 0 : i32
    return %c0_i32, %c0_i32_0 : i32, i32
  }
  func.func @transform_10(%arg0: i32) -> (i32, i32) {
    %c0_i32 = arith.constant 0 : i32
    %c0_i32_0 = arith.constant 0 : i32
    %c0_i32_1 = arith.constant 0 : i32
    return %c0_i32, %c0_i32_0 : i32, i32
  }
  func.func @transform_11(%arg0: i32) -> (i32, i32) {
    %c0_i32 = arith.constant 0 : i32
    %c0_i32_0 = arith.constant 0 : i32
    return %arg0, %c0_i32 : i32, i32
  }
}

</mosaic_0001>

<llo_original>
// kernel: tpu_custom_call.1
$region0: #{tpu_custom_call.1}
  #allocation0 [shape = 'u32[]', space=smem, size = 0x4, offset = 0x4, fixed_abs, tag = 'smem constant byte address 0x4 - core index']
  #allocation1 [shape = 'u32[144,128]{1,0:T(1,128)}', space=vmem, size = 0x12000, scoped, tag = 'internal scratch']
  %s0 = inlined_call_operand.hbm [shape: f32[8,16], index: 0, kind: input, shape index: {}]
  %s1 = inlined_call_operand.hbm [shape: f32[8,8], index: 1, kind: input, shape index: {}]
  %s2 = inlined_call_operand.vmem [shape: f32[16,64], index: 2, kind: input, shape index: {}]
  %s3 = inlined_call_operand.hbm [shape: f32[8,64], index: 3, kind: input, shape index: {}]
  %s4 = inlined_call_operand.vmem [shape: f32[1,64], index: 4, kind: input, shape index: {}]
  %s5 = inlined_call_operand.vmem [shape: f32[64,64], index: 5, kind: input, shape index: {}]
  %s6 = inlined_call_operand.vmem [shape: f32[1,64], index: 6, kind: input, shape index: {}]
  %s7 = inlined_call_operand.hbm [shape: f32[64,64], index: 7, kind: input, shape index: {}]
  %s8 = inlined_call_operand.vmem [shape: f32[1,64], index: 8, kind: input, shape index: {}]
  %s9 = inlined_call_operand.hbm [shape: f32[64,64], index: 9, kind: input, shape index: {}]
  %s10 = inlined_call_operand.vmem [shape: f32[64,1], index: 10, kind: input, shape index: {}]
  %s11 = inlined_call_operand.vmem [shape: f32[8,1], index: 11, kind: output, shape index: {}]
  %s12 = sld [smem:[#allocation0]]
  $region74: #{tpu_custom_call.1} parent=0
    _
  %s14 = ssub.s32 1, %s12
  %s15 = scalar_select 0, %s14, %s12
  $region1: #{tpu_custom_call.1} parent=0
    #allocation2 [shape = 'u8[4096]{0}', space=vmem, size = 0x1000, scoped, tag = 'input window, operand 0, single buffered']
    #allocation3 [shape = 's32[1]{0}', space=sflag, size = 0x4, scoped, tag = 'scoped memory for tpu_custom_call.1']
    #allocation4 [shape = 'u8[4096]{0}', space=vmem, size = 0x1000, scoped, tag = 'input window, operand 1, single buffered']
    #allocation5 [shape = 's32[1]{0}', space=sflag, size = 0x4, scoped, tag = 'scoped memory for tpu_custom_call.1']
    #allocation6 [shape = 'u8[4096]{0}', space=vmem, size = 0x1000, scoped, tag = 'input window, operand 3, single buffered']
    #allocation7 [shape = 'u8[32768]{0}', space=vmem, size = 0x8000, scoped, tag = 'input window, operand 7, single buffered']
    #allocation8 [shape = 's32[1]{0}', space=sflag, size = 0x4, scoped, tag = 'scoped memory for tpu_custom_call.1']
    #allocation9 [shape = 'u8[32768]{0}', space=vmem, size = 0x8000, scoped, tag = 'input window, operand 9, single buffered']
    %16 = vsyncpa [#allocation3], 0
    %17 = vsyncpa [#allocation5], 0
    %18 = vsyncpa [#allocation8], 0
    // Predicated region
    $region2: #{tpu_custom_call.1} parent=1 // pred_check
      _
    $region3: #{tpu_custom_call.1} parent=1 // pred_check_branch
      %20 = sbr.rel (0) target = $region5
    $region4: #{tpu_custom_call.1} parent=1 // pred_region
      %s22 = ssub.s32 128, 128
      %23 = vsyncadd [#allocation3], %s22
      %s25 = sshll.u32 [#allocation2], 4
      %s26 = int_to_ptr.vmem [resolvable:$true] %s25
      %28 = dma.hbm_to_vmem [thread:$0]  %s0, 128, %s26, [#allocation3]
    $region5: #{tpu_custom_call.1} parent=1 // pred_fallthru
      _
    // Predicated region
    $region6: #{tpu_custom_call.1} parent=1 // pred_check
      _
    $region7: #{tpu_custom_call.1} parent=1 // pred_check_branch
      %30 = sbr.rel (0) target = $region9
    $region8: #{tpu_custom_call.1} parent=1 // pred_region
      %s32 = ssub.s32 128, 128
      %33 = vsyncadd [#allocation5], %s32
      %s35 = sshll.u32 [#allocation4], 4
      %s36 = int_to_ptr.vmem [resolvable:$true] %s35
      %38 = dma.hbm_to_vmem [thread:$0]  %s1, 128, %s36, [#allocation5]
    $region9: #{tpu_custom_call.1} parent=1 // pred_fallthru
      _
    // Predicated region
    $region10: #{tpu_custom_call.1} parent=1 // pred_check
      _
    $region11: #{tpu_custom_call.1} parent=1 // pred_check_branch
      %40 = sbr.rel (0) target = $region13
    $region12: #{tpu_custom_call.1} parent=1 // pred_region
      _
    $region13: #{tpu_custom_call.1} parent=1 // pred_fallthru
      _
    // Predicated region
    $region14: #{tpu_custom_call.1} parent=1 // pred_check
      _
    $region15: #{tpu_custom_call.1} parent=1 // pred_check_branch
      %42 = sbr.rel (0) target = $region17
    $region16: #{tpu_custom_call.1} parent=1 // pred_region
      %s44 = ssub.s32 128, 128
      %45 = vsyncadd [#allocation5], %s44
      %s47 = sshll.u32 [#allocation6], 4
      %s48 = int_to_ptr.vmem [resolvable:$true] %s47
      %50 = dma.hbm_to_vmem [thread:$0]  %s3, 128, %s48, [#allocation5]
    $region17: #{tpu_custom_call.1} parent=1 // pred_fallthru
      _
    // Predicated region
    $region18: #{tpu_custom_call.1} parent=1 // pred_check
      _
    $region19: #{tpu_custom_call.1} parent=1 // pred_check_branch
      %52 = sbr.rel (0) target = $region21
    $region20: #{tpu_custom_call.1} parent=1 // pred_region
      _
    $region21: #{tpu_custom_call.1} parent=1 // pred_fallthru
      _
    // Predicated region
    $region22: #{tpu_custom_call.1} parent=1 // pred_check
      _
    $region23: #{tpu_custom_call.1} parent=1 // pred_check_branch
      %54 = sbr.rel (0) target = $region25
    $region24: #{tpu_custom_call.1} parent=1 // pred_region
      _
    $region25: #{tpu_custom_call.1} parent=1 // pred_fallthru
      _
    // Predicated region
    $region26: #{tpu_custom_call.1} parent=1 // pred_check
      _
    $region27: #{tpu_custom_call.1} parent=1 // pred_check_branch
      %56 = sbr.rel (0) target = $region29
    $region28: #{tpu_custom_call.1} parent=1 // pred_region
      _
    $region29: #{tpu_custom_call.1} parent=1 // pred_fallthru
      _
    // Predicated region
    $region30: #{tpu_custom_call.1} parent=1 // pred_check
      _
    $region31: #{tpu_custom_call.1} parent=1 // pred_check_branch
      %58 = sbr.rel (0) target = $region33
    $region32: #{tpu_custom_call.1} parent=1 // pred_region
      %s60 = ssub.s32 1024, 1024
      %61 = vsyncadd [#allocation8], %s60
      %s62 = sshll.u32 [#allocation7], 4
      %s63 = int_to_ptr.vmem [resolvable:$true] %s62
      %68 = dma.hbm_to_vmem [thread:$0]  %s7, 1024, %s63, [#allocation8], 128, 128, 8
    $region33: #{tpu_custom_call.1} parent=1 // pred_fallthru
      _
    // Predicated region
    $region34: #{tpu_custom_call.1} parent=1 // pred_check
      _
    $region35: #{tpu_custom_call.1} parent=1 // pred_check_branch
      %70 = sbr.rel (0) target = $region37
    $region36: #{tpu_custom_call.1} parent=1 // pred_region
      _
    $region37: #{tpu_custom_call.1} parent=1 // pred_fallthru
      _
    // Predicated region
    $region38: #{tpu_custom_call.1} parent=1 // pred_check
      _
    $region39: #{tpu_custom_call.1} parent=1 // pred_check_branch
      %72 = sbr.rel (0) target = $region41
    $region40: #{tpu_custom_call.1} parent=1 // pred_region
      %s74 = ssub.s32 1024, 1024
      %75 = vsyncadd [#allocation8], %s74
      %s76 = sshll.u32 [#allocation9], 4
      %s77 = int_to_ptr.vmem [resolvable:$true] %s76
      %82 = dma.hbm_to_vmem [thread:$0]  %s9, 1024, %s77, [#allocation8], 128, 128, 8
    $region41: #{tpu_custom_call.1} parent=1 // pred_fallthru
      _
    // Predicated region
    $region42: #{tpu_custom_call.1} parent=1 // pred_check
      _
    $region43: #{tpu_custom_call.1} parent=1 // pred_check_branch
      %84 = sbr.rel (0) target = $region45
    $region44: #{tpu_custom_call.1} parent=1 // pred_region
      _
    $region45: #{tpu_custom_call.1} parent=1 // pred_fallthru
      _
    // Predicated region
    $region46: #{tpu_custom_call.1} parent=1 // pred_check
      _
    $region47: #{tpu_custom_call.1} parent=1 // pred_check_branch
      %86 = sbr.rel (0) target = $region49
    $region48: #{tpu_custom_call.1} parent=1 // pred_region
      %87 = dma.done [#allocation3], 128
    $region49: #{tpu_custom_call.1} parent=1 // pred_fallthru
      _
    // Predicated region
    $region50: #{tpu_custom_call.1} parent=1 // pred_check
      _
    $region51: #{tpu_custom_call.1} parent=1 // pred_check_branch
      %89 = sbr.rel (0) target = $region53
    $region52: #{tpu_custom_call.1} parent=1 // pred_region
      %90 = dma.done [#allocation5], 128
    $region53: #{tpu_custom_call.1} parent=1 // pred_fallthru
      _
    // Predicated region
    $region54: #{tpu_custom_call.1} parent=1 // pred_check
      _
    $region55: #{tpu_custom_call.1} parent=1 // pred_check_branch
      %92 = sbr.rel (0) target = $region57
    $region56: #{tpu_custom_call.1} parent=1 // pred_region
      %93 = dma.done [#allocation5], 128
    $region57: #{tpu_custom_call.1} parent=1 // pred_fallthru
      _
    // Predicated region
    $region58: #{tpu_custom_call.1} parent=1 // pred_check
      _
    $region59: #{tpu_custom_call.1} parent=1 // pred_check_branch
      %95 = sbr.rel (0) target = $region61
    $region60: #{tpu_custom_call.1} parent=1 // pred_region
      %96 = dma.done [#allocation8], 1024
    $region61: #{tpu_custom_call.1} parent=1 // pred_fallthru
      _
    // Predicated region
    $region62: #{tpu_custom_call.1} parent=1 // pred_check
      _
    $region63: #{tpu_custom_call.1} parent=1 // pred_check_branch
      %98 = sbr.rel (0) target = $region65
    $region64: #{tpu_custom_call.1} parent=1 // pred_region
      %99 = dma.done [#allocation8], 1024
    $region65: #{tpu_custom_call.1} parent=1 // pred_fallthru
      _
    %v100 = vld [vmem:[#allocation2] sm:$0xff]
    %v101 = vld [vmem:[%s2] sm:$0xff]
    %v102 = vld [vmem:[%s2 + $0x8] sm:$0xff]
    %v103 = vld [vmem:[#allocation4] sm:$0xff]
    %v104 = vld [vmem:[#allocation6] sm:$0xff]
    %vm105 = vcmask 64512
    %v107 = vsel %vm105, %v103, 0
    %109 = vmatprep.subr.mxu0 0.0
    %110 = vmatpush1.msra.mxu0 %v104
    %111 = vmatprep.subr.mxu0 0.0
    %112 = vmatpush1.msra.mxu0 0.0
    %113 = vmatprep.subr.mxu0 0.0
    %114 = vmatpush1.msra.mxu0 0.0
    %115 = vmatprep.subr.mxu0 0.0
    %116 = vmatpush1.msra.mxu0 0.0
    %117 = vmatprep.subr.mxu0 0.0
    %118 = vmatpush1.msra.mxu0 0.0
    %119 = vmatprep.subr.mxu0 0.0
    %120 = vmatpush1.msra.mxu0 0.0
    %121 = vmatprep.subr.mxu0 0.0
    %122 = vmatpush1.msra.mxu0 0.0
    %123 = vmatprep.subr.mxu0 0.0
    %124 = vmatpush1.msra.mxu0 0.0
    %125 = vmatprep.subr.mxu0 0.0
    %126 = vmatpush1.msra.mxu0 0.0
    %127 = vmatprep.subr.mxu0 0.0
    %128 = vmatpush1.msra.mxu0 0.0
    %129 = vmatprep.subr.mxu0 0.0
    %130 = vmatpush1.msra.mxu0 0.0
    %131 = vmatprep.subr.mxu0 0.0
    %132 = vmatpush1.msra.mxu0 0.0
    %133 = vmatprep.subr.mxu0 0.0
    %134 = vmatpush1.msra.mxu0 0.0
    %135 = vmatprep.subr.mxu0 0.0
    %136 = vmatpush1.msra.mxu0 0.0
    %137 = vmatprep.subr.mxu0 0.0
    %138 = vmatpush1.msra.mxu0 0.0
    %139 = vmatprep.subr.mxu0 0.0
    %140 = vmatpush1.msra.mxu0 0.0
    %141 = vmatprep.subr.mxu0 0.0
    %142 = vmatpush1.msra.mxu0 0.0
    %143 = vmatprep.subr.mxu0 0.0
    %144 = vmatpush1.msra.mxu0 0.0
    %145 = vmatprep.subr.mxu0 0.0
    %146 = vmatpush1.msra.mxu0 0.0
    %147 = vmatprep.subr.mxu0 0.0
    %148 = vmatpush1.msra.mxu0 0.0
    %149 = vmatprep.subr.mxu0 0.0
    %150 = vmatpush1.msra.mxu0 0.0
    %151 = vmatprep.subr.mxu0 0.0
    %152 = vmatpush1.msra.mxu0 0.0
    %153 = vmatprep.subr.mxu0 0.0
    %154 = vmatpush1.msra.mxu0 0.0
    %155 = vmatprep.subr.mxu0 0.0
    %156 = vmatpush1.msra.mxu0 0.0
    %157 = vmatprep.subr.mxu0 0.0
    %158 = vmatpush1.msra.mxu0 0.0
    %159 = vmatprep.subr.mxu0 0.0
    %160 = vmatpush1.msra.mxu0 0.0
    %161 = vmatprep.subr.mxu0 0.0
    %162 = vmatpush1.msra.mxu0 0.0
    %163 = vmatprep.subr.mxu0 0.0
    %164 = vmatpush1.msra.mxu0 0.0
    %165 = vmatprep.subr.mxu0 0.0
    %166 = vmatpush1.msra.mxu0 0.0
    %167 = vmatprep.subr.mxu0 0.0
    %168 = vmatpush1.msra.mxu0 0.0
    %169 = vmatprep.subr.mxu0 0.0
    %170 = vmatpush1.msra.mxu0 0.0
    %171 = vmatprep.subr.mxu0 0.0
    %172 = vmatpush1.msra.mxu0 0.0
    %173 = vmatprep.mubr.f32.mxu0 0.0
    %174 = vmatmul.mubr.f32.gmra.mrb[0].mxu0 %v107
    %v175 = vpop.f32.mrb[0].mxu0
    %v176 = vadd.f32 0.0, %v175
    %v177 = vpop.f32.mrb[0].mxu0
    %178 = vdwg.mxu0
    %vm179 = vcmask 130048
    %v181 = vsel %vm179, %v100, 0
    %183 = vmatprep.subr.mxu0 0.0
    %184 = vmatpush1.msra.mxu0 %v101
    %185 = vmatprep.subr.mxu0 0.0
    %186 = vmatpush1.msra.mxu0 %v102
    %187 = vmatprep.subr.mxu0 0.0
    %188 = vmatpush1.msra.mxu0 0.0
    %189 = vmatprep.subr.mxu0 0.0
    %190 = vmatpush1.msra.mxu0 0.0
    %191 = vmatprep.subr.mxu0 0.0
    %192 = vmatpush1.msra.mxu0 0.0
    %193 = vmatprep.subr.mxu0 0.0
    %194 = vmatpush1.msra.mxu0 0.0
    %195 = vmatprep.subr.mxu0 0.0
    %196 = vmatpush1.msra.mxu0 0.0
    %197 = vmatprep.subr.mxu0 0.0
    %198 = vmatpush1.msra.mxu0 0.0
    %199 = vmatprep.subr.mxu0 0.0
    %200 = vmatpush1.msra.mxu0 0.0
    %201 = vmatprep.subr.mxu0 0.0
    %202 = vmatpush1.msra.mxu0 0.0
    %203 = vmatprep.subr.mxu0 0.0
    %204 = vmatpush1.msra.mxu0 0.0
    %205 = vmatprep.subr.mxu0 0.0
    %206 = vmatpush1.msra.mxu0 0.0
    %207 = vmatprep.subr.mxu0 0.0
    %208 = vmatpush1.msra.mxu0 0.0
    %209 = vmatprep.subr.mxu0 0.0
    %210 = vmatpush1.msra.mxu0 0.0
    %211 = vmatprep.subr.mxu0 0.0
    %212 = vmatpush1.msra.mxu0 0.0
    %213 = vmatprep.subr.mxu0 0.0
    %214 = vmatpush1.msra.mxu0 0.0
    %215 = vmatprep.subr.mxu0 0.0
    %216 = vmatpush1.msra.mxu0 0.0
    %217 = vmatprep.subr.mxu0 0.0
    %218 = vmatpush1.msra.mxu0 0.0
    %219 = vmatprep.subr.mxu0 0.0
    %220 = vmatpush1.msra.mxu0 0.0
    %221 = vmatprep.subr.mxu0 0.0
    %222 = vmatpush1.msra.mxu0 0.0
    %223 = vmatprep.subr.mxu0 0.0
    %224 = vmatpush1.msra.mxu0 0.0
    %225 = vmatprep.subr.mxu0 0.0
    %226 = vmatpush1.msra.mxu0 0.0
    %227 = vmatprep.subr.mxu0 0.0
    %228 = vmatpush1.msra.mxu0 0.0
    %229 = vmatprep.subr.mxu0 0.0
    %230 = vmatpush1.msra.mxu0 0.0
    %231 = vmatprep.subr.mxu0 0.0
    %232 = vmatpush1.msra.mxu0 0.0
    %233 = vmatprep.subr.mxu0 0.0
    %234 = vmatpush1.msra.mxu0 0.0
    %235 = vmatprep.subr.mxu0 0.0
    %236 = vmatpush1.msra.mxu0 0.0
    %237 = vmatprep.subr.mxu0 0.0
    %238 = vmatpush1.msra.mxu0 0.0
    %239 = vmatprep.subr.mxu0 0.0
    %240 = vmatpush1.msra.mxu0 0.0
    %241 = vmatprep.subr.mxu0 0.0
    %242 = vmatpush1.msra.mxu0 0.0
    %243 = vmatprep.subr.mxu0 0.0
    %244 = vmatpush1.msra.mxu0 0.0
    %245 = vmatprep.subr.mxu0 0.0
    %246 = vmatpush1.msra.mxu0 0.0
    %247 = vmatprep.mubr.f32.mxu0 0.0
    %248 = vmatmul.mubr.f32.gmra.mrb[0].mxu0 %v181
    %v249 = vpop.f32.mrb[0].mxu0
    %v250 = vadd.f32 %v176, %v249
    %v251 = vpop.f32.mrb[0].mxu0
    %252 = vdwg.mxu0
    %v253 = vld [vmem:[%s4] sm:$0x1]
    %v255 = vlaneseq
    %v256 = vshrl.u32 %v255, 7
    %v257 = vsub.s32 0, %v256
    %v258 = vrot.slane %v253, %v257
    %v260 = vadd.f32 %v250, %v258
    %v261 = vmax.f32 %v260, 0.0
    %v262 = vld [vmem:[%s5] sm:$0xff]
    %v263 = vld [vmem:[%s5 + $0x8] sm:$0xff]
    %v264 = vld [vmem:[%s5 + $0x10] sm:$0xff]
    %v265 = vld [vmem:[%s5 + $0x18] sm:$0xff]
    %v266 = vld [vmem:[%s5 + $0x20] sm:$0xff]
    %v267 = vld [vmem:[%s5 + $0x28] sm:$0xff]
    %v268 = vld [vmem:[%s5 + $0x30] sm:$0xff]
    %v269 = vld [vmem:[%s5 + $0x38] sm:$0xff]
    %v270 = vld [vmem:[%s6] sm:$0x1]
    %v272 = vlaneseq
    %v273 = vshrl.u32 %v272, 7
    %v274 = vsub.s32 0, %v273
    %v275 = vrot.slane %v270, %v274
    %vm277 = vcmask 523264
    %v279 = vsel %vm277, %v261, 0
    %281 = vmatprep.subr.mxu0 0.0
    %282 = vmatpush1.msra.mxu0 %v262
    %283 = vmatprep.subr.mxu0 0.0
    %284 = vmatpush1.msra.mxu0 %v263
    %285 = vmatprep.subr.mxu0 0.0
    %286 = vmatpush1.msra.mxu0 %v264
    %287 = vmatprep.subr.mxu0 0.0
    %288 = vmatpush1.msra.mxu0 %v265
    %289 = vmatprep.subr.mxu0 0.0
    %290 = vmatpush1.msra.mxu0 %v266
    %291 = vmatprep.subr.mxu0 0.0
    %292 = vmatpush1.msra.mxu0 %v267
    %293 = vmatprep.subr.mxu0 0.0
    %294 = vmatpush1.msra.mxu0 %v268
    %295 = vmatprep.subr.mxu0 0.0
    %296 = vmatpush1.msra.mxu0 %v269
    %297 = vmatprep.subr.mxu0 0.0
    %298 = vmatpush1.msra.mxu0 0.0
    %299 = vmatprep.subr.mxu0 0.0
    %300 = vmatpush1.msra.mxu0 0.0
    %301 = vmatprep.subr.mxu0 0.0
    %302 = vmatpush1.msra.mxu0 0.0
    %303 = vmatprep.subr.mxu0 0.0
    %304 = vmatpush1.msra.mxu0 0.0
    %305 = vmatprep.subr.mxu0 0.0
    %306 = vmatpush1.msra.mxu0 0.0
    %307 = vmatprep.subr.mxu0 0.0
    %308 = vmatpush1.msra.mxu0 0.0
    %309 = vmatprep.subr.mxu0 0.0
    %310 = vmatpush1.msra.mxu0 0.0
    %311 = vmatprep.subr.mxu0 0.0
    %312 = vmatpush1.msra.mxu0 0.0
    %313 = vmatprep.subr.mxu0 0.0
    %314 = vmatpush1.msra.mxu0 0.0
    %315 = vmatprep.subr.mxu0 0.0
    %316 = vmatpush1.msra.mxu0 0.0
    %317 = vmatprep.subr.mxu0 0.0
    %318 = vmatpush1.msra.mxu0 0.0
    %319 = vmatprep.subr.mxu0 0.0
    %320 = vmatpush1.msra.mxu0 0.0
    %321 = vmatprep.subr.mxu0 0.0
    %322 = vmatpush1.msra.mxu0 0.0
    %323 = vmatprep.subr.mxu0 0.0
    %324 = vmatpush1.msra.mxu0 0.0
    %325 = vmatprep.subr.mxu0 0.0
    %326 = vmatpush1.msra.mxu0 0.0
    %327 = vmatprep.subr.mxu0 0.0
    %328 = vmatpush1.msra.mxu0 0.0
    %329 = vmatprep.subr.mxu0 0.0
    %330 = vmatpush1.msra.mxu0 0.0
    %331 = vmatprep.subr.mxu0 0.0
    %332 = vmatpush1.msra.mxu0 0.0
    %333 = vmatprep.subr.mxu0 0.0
    %334 = vmatpush1.msra.mxu0 0.0
    %335 = vmatprep.subr.mxu0 0.0
    %336 = vmatpush1.msra.mxu0 0.0
    %337 = vmatprep.subr.mxu0 0.0
    %338 = vmatpush1.msra.mxu0 0.0
    %339 = vmatprep.subr.mxu0 0.0
    %340 = vmatpush1.msra.mxu0 0.0
    %341 = vmatprep.subr.mxu0 0.0
    %342 = vmatpush1.msra.mxu0 0.0
    %343 = vmatprep.subr.mxu0 0.0
    %344 = vmatpush1.msra.mxu0 0.0
    %345 = vmatprep.mubr.f32.mxu0 0.0
    %346 = vmatmul.mubr.f32.gmra.mrb[0].mxu0 %v279
    %v347 = vpop.f32.mrb[0].mxu0
    %v348 = vadd.f32 %v275, %v347
    %v349 = vpop.f32.mrb[0].mxu0
    %350 = vdwg.mxu0
    %v351 = vmax.f32 %v348, 0.0
    %v352 = vld [vmem:[#allocation7] sm:$0xff]
    %v353 = vld [vmem:[#allocation7 + $0x8] sm:$0xff]
    %v354 = vld [vmem:[#allocation7 + $0x10] sm:$0xff]
    %v355 = vld [vmem:[#allocation7 + $0x18] sm:$0xff]
    %v356 = vld [vmem:[#allocation7 + $0x20] sm:$0xff]
    %v357 = vld [vmem:[#allocation7 + $0x28] sm:$0xff]
    %v358 = vld [vmem:[#allocation7 + $0x30] sm:$0xff]
    %v359 = vld [vmem:[#allocation7 + $0x38] sm:$0xff]
    %v360 = vld [vmem:[%s8] sm:$0x1]
    %v362 = vlaneseq
    %v363 = vshrl.u32 %v362, 7
    %v364 = vsub.s32 0, %v363
    %v365 = vrot.slane %v360, %v364
    %v368 = vsel %vm277, %v351, 0
    %370 = vmatprep.subr.mxu0 0.0
    %371 = vmatpush1.msra.mxu0 %v352
    %372 = vmatprep.subr.mxu0 0.0
    %373 = vmatpush1.msra.mxu0 %v353
    %374 = vmatprep.subr.mxu0 0.0
    %375 = vmatpush1.msra.mxu0 %v354
    %376 = vmatprep.subr.mxu0 0.0
    %377 = vmatpush1.msra.mxu0 %v355
    %378 = vmatprep.subr.mxu0 0.0
    %379 = vmatpush1.msra.mxu0 %v356
    %380 = vmatprep.subr.mxu0 0.0
    %381 = vmatpush1.msra.mxu0 %v357
    %382 = vmatprep.subr.mxu0 0.0
    %383 = vmatpush1.msra.mxu0 %v358
    %384 = vmatprep.subr.mxu0 0.0
    %385 = vmatpush1.msra.mxu0 %v359
    %386 = vmatprep.subr.mxu0 0.0
    %387 = vmatpush1.msra.mxu0 0.0
    %388 = vmatprep.subr.mxu0 0.0
    %389 = vmatpush1.msra.mxu0 0.0
    %390 = vmatprep.subr.mxu0 0.0
    %391 = vmatpush1.msra.mxu0 0.0
    %392 = vmatprep.subr.mxu0 0.0
    %393 = vmatpush1.msra.mxu0 0.0
    %394 = vmatprep.subr.mxu0 0.0
    %395 = vmatpush1.msra.mxu0 0.0
    %396 = vmatprep.subr.mxu0 0.0
    %397 = vmatpush1.msra.mxu0 0.0
    %398 = vmatprep.subr.mxu0 0.0
    %399 = vmatpush1.msra.mxu0 0.0
    %400 = vmatprep.subr.mxu0 0.0
    %401 = vmatpush1.msra.mxu0 0.0
    %402 = vmatprep.subr.mxu0 0.0
    %403 = vmatpush1.msra.mxu0 0.0
    %404 = vmatprep.subr.mxu0 0.0
    %405 = vmatpush1.msra.mxu0 0.0
    %406 = vmatprep.subr.mxu0 0.0
    %407 = vmatpush1.msra.mxu0 0.0
    %408 = vmatprep.subr.mxu0 0.0
    %409 = vmatpush1.msra.mxu0 0.0
    %410 = vmatprep.subr.mxu0 0.0
    %411 = vmatpush1.msra.mxu0 0.0
    %412 = vmatprep.subr.mxu0 0.0
    %413 = vmatpush1.msra.mxu0 0.0
    %414 = vmatprep.subr.mxu0 0.0
    %415 = vmatpush1.msra.mxu0 0.0
    %416 = vmatprep.subr.mxu0 0.0
    %417 = vmatpush1.msra.mxu0 0.0
    %418 = vmatprep.subr.mxu0 0.0
    %419 = vmatpush1.msra.mxu0 0.0
    %420 = vmatprep.subr.mxu0 0.0
    %421 = vmatpush1.msra.mxu0 0.0
    %422 = vmatprep.subr.mxu0 0.0
    %423 = vmatpush1.msra.mxu0 0.0
    %424 = vmatprep.subr.mxu0 0.0
    %425 = vmatpush1.msra.mxu0 0.0
    %426 = vmatprep.subr.mxu0 0.0
    %427 = vmatpush1.msra.mxu0 0.0
    %428 = vmatprep.subr.mxu0 0.0
    %429 = vmatpush1.msra.mxu0 0.0
    %430 = vmatprep.subr.mxu0 0.0
    %431 = vmatpush1.msra.mxu0 0.0
    %432 = vmatprep.subr.mxu0 0.0
    %433 = vmatpush1.msra.mxu0 0.0
    %434 = vmatprep.mubr.f32.mxu0 0.0
    %435 = vmatmul.mubr.f32.gmra.mrb[0].mxu0 %v368
    %v436 = vpop.f32.mrb[0].mxu0
    %v437 = vadd.f32 %v365, %v436
    %v438 = vpop.f32.mrb[0].mxu0
    %439 = vdwg.mxu0
    %v440 = vmax.f32 %v437, 0.0
    %v441 = vld [vmem:[#allocation9] sm:$0xff]
    %v442 = vld [vmem:[#allocation9 + $0x8] sm:$0xff]
    %v443 = vld [vmem:[#allocation9 + $0x10] sm:$0xff]
    %v444 = vld [vmem:[#allocation9 + $0x18] sm:$0xff]
    %v445 = vld [vmem:[#allocation9 + $0x20] sm:$0xff]
    %v446 = vld [vmem:[#allocation9 + $0x28] sm:$0xff]
    %v447 = vld [vmem:[#allocation9 + $0x30] sm:$0xff]
    %v448 = vld [vmem:[#allocation9 + $0x38] sm:$0xff]
    %v450 = vsel %vm277, %v440, 0
    %452 = vmatprep.subr.mxu0 0.0
    %453 = vmatpush1.msra.mxu0 %v441
    %454 = vmatprep.subr.mxu0 0.0
    %455 = vmatpush1.msra.mxu0 %v442
    %456 = vmatprep.subr.mxu0 0.0
    %457 = vmatpush1.msra.mxu0 %v443
    %458 = vmatprep.subr.mxu0 0.0
    %459 = vmatpush1.msra.mxu0 %v444
    %460 = vmatprep.subr.mxu0 0.0
    %461 = vmatpush1.msra.mxu0 %v445
    %462 = vmatprep.subr.mxu0 0.0
    %463 = vmatpush1.msra.mxu0 %v446
    %464 = vmatprep.subr.mxu0 0.0
    %465 = vmatpush1.msra.mxu0 %v447
    %466 = vmatprep.subr.mxu0 0.0
    %467 = vmatpush1.msra.mxu0 %v448
    %468 = vmatprep.subr.mxu0 0.0
    %469 = vmatpush1.msra.mxu0 0.0
    %470 = vmatprep.subr.mxu0 0.0
    %471 = vmatpush1.msra.mxu0 0.0
    %472 = vmatprep.subr.mxu0 0.0
    %473 = vmatpush1.msra.mxu0 0.0
    %474 = vmatprep.subr.mxu0 0.0
    %475 = vmatpush1.msra.mxu0 0.0
    %476 = vmatprep.subr.mxu0 0.0
    %477 = vmatpush1.msra.mxu0 0.0
    %478 = vmatprep.subr.mxu0 0.0
    %479 = vmatpush1.msra.mxu0 0.0
    %480 = vmatprep.subr.mxu0 0.0
    %481 = vmatpush1.msra.mxu0 0.0
    %482 = vmatprep.subr.mxu0 0.0
    %483 = vmatpush1.msra.mxu0 0.0
    %484 = vmatprep.subr.mxu0 0.0
    %485 = vmatpush1.msra.mxu0 0.0
    %486 = vmatprep.subr.mxu0 0.0
    %487 = vmatpush1.msra.mxu0 0.0
    %488 = vmatprep.subr.mxu0 0.0
    %489 = vmatpush1.msra.mxu0 0.0
    %490 = vmatprep.subr.mxu0 0.0
    %491 = vmatpush1.msra.mxu0 0.0
    %492 = vmatprep.subr.mxu0 0.0
    %493 = vmatpush1.msra.mxu0 0.0
    %494 = vmatprep.subr.mxu0 0.0
    %495 = vmatpush1.msra.mxu0 0.0
    %496 = vmatprep.subr.mxu0 0.0
    %497 = vmatpush1.msra.mxu0 0.0
    %498 = vmatprep.subr.mxu0 0.0
    %499 = vmatpush1.msra.mxu0 0.0
    %500 = vmatprep.subr.mxu0 0.0
    %501 = vmatpush1.msra.mxu0 0.0
    %502 = vmatprep.subr.mxu0 0.0
    %503 = vmatpush1.msra.mxu0 0.0
    %504 = vmatprep.subr.mxu0 0.0
    %505 = vmatpush1.msra.mxu0 0.0
    %506 = vmatprep.subr.mxu0 0.0
    %507 = vmatpush1.msra.mxu0 0.0
    %508 = vmatprep.subr.mxu0 0.0
    %509 = vmatpush1.msra.mxu0 0.0
    %510 = vmatprep.subr.mxu0 0.0
    %511 = vmatpush1.msra.mxu0 0.0
    %512 = vmatprep.subr.mxu0 0.0
    %513 = vmatpush1.msra.mxu0 0.0
    %514 = vmatprep.subr.mxu0 0.0
    %515 = vmatpush1.msra.mxu0 0.0
    %516 = vmatprep.mubr.f32.mxu0 0.0
    %517 = vmatmul.mubr.f32.gmra.mrb[0].mxu0 %v450
    %v518 = vpop.f32.mrb[0].mxu0
    %v519 = vadd.f32 0.0, %v518
    %v520 = vpop.f32.mrb[0].mxu0
    %521 = vdwg.mxu0
    %v522 = vmul.f32 %v440, %v519
    %v523 = vld [vmem:[%s10] sm:$0xff]
    %v524 = vld [vmem:[%s10 + $0x8] sm:$0xff]
    %v525 = vld [vmem:[%s10 + $0x10] sm:$0xff]
    %v526 = vld [vmem:[%s10 + $0x18] sm:$0xff]
    %v527 = vld [vmem:[%s10 + $0x20] sm:$0xff]
    %v528 = vld [vmem:[%s10 + $0x28] sm:$0xff]
    %v529 = vld [vmem:[%s10 + $0x30] sm:$0xff]
    %v530 = vld [vmem:[%s10 + $0x38] sm:$0xff]
    %v532 = vsel %vm277, %v522, 0
    %534 = vmatprep.subr.mxu0 0.0
    %535 = vmatpush1.msra.mxu0 %v523
    %536 = vmatprep.subr.mxu0 0.0
    %537 = vmatpush1.msra.mxu0 %v524
    %538 = vmatprep.subr.mxu0 0.0
    %539 = vmatpush1.msra.mxu0 %v525
    %540 = vmatprep.subr.mxu0 0.0
    %541 = vmatpush1.msra.mxu0 %v526
    %542 = vmatprep.subr.mxu0 0.0
    %543 = vmatpush1.msra.mxu0 %v527
    %544 = vmatprep.subr.mxu0 0.0
    %545 = vmatpush1.msra.mxu0 %v528
    %546 = vmatprep.subr.mxu0 0.0
    %547 = vmatpush1.msra.mxu0 %v529
    %548 = vmatprep.subr.mxu0 0.0
    %549 = vmatpush1.msra.mxu0 %v530
    %550 = vmatprep.subr.mxu0 0.0
    %551 = vmatpush1.msra.mxu0 0.0
    %552 = vmatprep.subr.mxu0 0.0
    %553 = vmatpush1.msra.mxu0 0.0
    %554 = vmatprep.subr.mxu0 0.0
    %555 = vmatpush1.msra.mxu0 0.0
    %556 = vmatprep.subr.mxu0 0.0
    %557 = vmatpush1.msra.mxu0 0.0
    %558 = vmatprep.subr.mxu0 0.0
    %559 = vmatpush1.msra.mxu0 0.0
    %560 = vmatprep.subr.mxu0 0.0
    %561 = vmatpush1.msra.mxu0 0.0
    %562 = vmatprep.subr.mxu0 0.0
    %563 = vmatpush1.msra.mxu0 0.0
    %564 = vmatprep.subr.mxu0 0.0
    %565 = vmatpush1.msra.mxu0 0.0
    %566 = vmatprep.subr.mxu0 0.0
    %567 = vmatpush1.msra.mxu0 0.0
    %568 = vmatprep.subr.mxu0 0.0
    %569 = vmatpush1.msra.mxu0 0.0
    %570 = vmatprep.subr.mxu0 0.0
    %571 = vmatpush1.msra.mxu0 0.0
    %572 = vmatprep.subr.mxu0 0.0
    %573 = vmatpush1.msra.mxu0 0.0
    %574 = vmatprep.subr.mxu0 0.0
    %575 = vmatpush1.msra.mxu0 0.0
    %576 = vmatprep.subr.mxu0 0.0
    %577 = vmatpush1.msra.mxu0 0.0
    %578 = vmatprep.subr.mxu0 0.0
    %579 = vmatpush1.msra.mxu0 0.0
    %580 = vmatprep.subr.mxu0 0.0
    %581 = vmatpush1.msra.mxu0 0.0
    %582 = vmatprep.subr.mxu0 0.0
    %583 = vmatpush1.msra.mxu0 0.0
    %584 = vmatprep.subr.mxu0 0.0
    %585 = vmatpush1.msra.mxu0 0.0
    %586 = vmatprep.subr.mxu0 0.0
    %587 = vmatpush1.msra.mxu0 0.0
    %588 = vmatprep.subr.mxu0 0.0
    %589 = vmatpush1.msra.mxu0 0.0
    %590 = vmatprep.subr.mxu0 0.0
    %591 = vmatpush1.msra.mxu0 0.0
    %592 = vmatprep.subr.mxu0 0.0
    %593 = vmatpush1.msra.mxu0 0.0
    %594 = vmatprep.subr.mxu0 0.0
    %595 = vmatpush1.msra.mxu0 0.0
    %596 = vmatprep.subr.mxu0 0.0
    %597 = vmatpush1.msra.mxu0 0.0
    %598 = vmatprep.mubr.f32.mxu0 0.0
    %599 = vmatmul.mubr.f32.gmra.mrb[0].mxu0 %v532
    %v600 = vpop.f32.mrb[0].mxu0
    %v601 = vadd.f32 0.0, %v600
    %v602 = vpop.f32.mrb[0].mxu0
    %603 = vdwg.mxu0
    %vm604 = vcmask 7168
    %605 = vst.msk [vmem:[%s11] sm:$0xff] %vm604, %v601
    // Predicated region
    $region66: #{tpu_custom_call.1} parent=1 // pred_check
      _
    $region67: #{tpu_custom_call.1} parent=1 // pred_check_branch
      %607 = sbr.rel (0) target = $region69
    $region68: #{tpu_custom_call.1} parent=1 // pred_region
      _
    $region69: #{tpu_custom_call.1} parent=1 // pred_fallthru
      _
    // Predicated region
    $region70: #{tpu_custom_call.1} parent=1 // pred_check
      _
    $region71: #{tpu_custom_call.1} parent=1 // pred_check_branch
      %609 = sbr.rel (0) target = $region73
    $region72: #{tpu_custom_call.1} parent=1 // pred_region
      _
    $region73: #{tpu_custom_call.1} parent=1 // pred_fallthru
      _
    %610 = vsyncpa [#allocation3], 1
    %611 = vsyncpa [#allocation5], 1
    %612 = vsyncpa [#allocation8], 1

</llo_original>
